<compile_context>
chip_gen: v6e
topology: v6e:2x2x1
jax: 0.10.0
libtpu: 0.0.40
codegen_flags: <defaults>
</compile_context>

<pallas_src>
import functools
import math

import jax
import jax.numpy as jnp
from jax import lax
from jax.experimental import pallas as pl
from jax.experimental.pallas import tpu as pltpu

_MXU_DTYPE = jnp.bfloat16   # MXU-native inputs (f32 accumulation is kept).
_SCORE_LANES = 128          # lane-dense score slab width.


def _round_up(x, m):
    return (x + m - 1) // m * m


def _pad_batch(x, axis, b_pad):
    pad = b_pad - x.shape[axis]
    if pad == 0:
        return x
    widths = [(0, 0)] * x.ndim
    widths[axis] = (0, pad)
    return jnp.pad(x, widths)


# ----------------------------------------------------------------------------
# The single fused Pallas kernel (one batch tile per grid step)
# ----------------------------------------------------------------------------
def _hgnn_kernel(n_usu_1_hop, n_usu_2_hop,
                 dsd2_a_ref,    # (Hd, BT, D)    pre-reduced & pre-weighted nbr sums
                 dsd2_se_ref,   # (Hd, BT, D)    per-hop ego symptom embeddings
                 dsd1_se_ref,   # (BT, D)        target disease embedding
                 usu3_a_ref,    # (n1*n2, BT, D) pre-reduced & pre-weighted nbr sums
                 usu2_se_ref,   # (n1, BT, D)    per-hop ego symptom embeddings
                 wts_ref,       # (n1+2, BT, 1)  [dsd1_wt, usu1_wt, usu2_wt_0..n1-1]
                 w_dsd2_ref, w_dsd1_ref,         # (2D, D) fused [W1;W2]
                 w_usu3_ref,                     # (D, D)
                 w_usu2_ref,                     # (2D, D) fused [W1;W2]
                 w_usu1_ref,                     # (D, D)
                 score_ref):    # (BT, 128)      lane-dense score slab
    def l2norm(x):
        # F.normalize(p=2, dim=-1) via rsqrt on the EUP (no f32 divide on VPU).
        ss = jnp.sum(x * x, axis=-1, keepdims=True)
        return x * lax.rsqrt(jnp.maximum(ss, 1e-24))

    def mm(lhs, w_ref):
        return jnp.dot(lhs.astype(_MXU_DTYPE), w_ref[...],
                       preferred_element_type=jnp.float32)

    def gated(a, se, w_ref, normalize):
        # tanh(W1(a) + W2(a*se) + W1(se)) == tanh([a+se, a*se] @ [W1;W2])
        shp = a.shape
        m, d = math.prod(shp[:-1]), shp[-1]
        lhs = jnp.concatenate([(a + se).reshape(m, d),
                               (a * se).reshape(m, d)], axis=-1)
        out = jnp.tanh(mm(lhs, w_ref))
        if normalize:
            out = l2norm(out)
        return out.reshape(shp)

    def plain(a, w_ref, normalize):
        shp = a.shape
        m, d = math.prod(shp[:-1]), shp[-1]
        out = jnp.tanh(mm(a.reshape(m, d), w_ref))
        if normalize:
            out = l2norm(out)
        return out.reshape(shp)

    wts = wts_ref[...]          # (n1+2, BT, 1)
    dsd1_wt = wts[0]            # (BT, 1)
    usu1_wt = wts[1]            # (BT, 1)
    usu2_wt = wts[2:]           # (n1, BT, 1)

    # ---------------- disease (dsd) metapath ----------------
    o_dsd2 = gated(dsd2_a_ref[...], dsd2_se_ref[...],
                   w_dsd2_ref, normalize=True)                      # (Hd, BT, D)
    emb_dise = gated(jnp.sum(o_dsd2, axis=0) * dsd1_wt,
                     dsd1_se_ref[...], w_dsd1_ref, normalize=False)  # (BT, D)

    # ---------------- user (usu) metapath ----------------
    o_usu3 = plain(usu3_a_ref[...], w_usu3_ref, normalize=True)     # (n1*n2, BT, D)
    h3, bt, d = o_usu3.shape
    s2 = jnp.sum(o_usu3.reshape(n_usu_1_hop, n_usu_2_hop, bt, d), axis=1)
    o_usu2 = gated(s2 * usu2_wt, usu2_se_ref[...],
                   w_usu2_ref, normalize=True)                       # (n1, BT, D)
    emb_user = plain(jnp.sum(o_usu2, axis=0) * usu1_wt,
                     w_usu1_ref, normalize=False)                    # (BT, D)

    # prediction score, broadcast across 128 lanes -> unmasked full-width store
    score = jnp.sum(emb_dise * emb_user, axis=-1, keepdims=True)     # (BT, 1)
    score_ref[...] = jnp.broadcast_to(score, score_ref.shape)


# ----------------------------------------------------------------------------
# Wrapper: gathers / neighbor reductions in XLA (fused), one pallas_call
# ----------------------------------------------------------------------------
def hgnn_fused_forward(params, data, label, *,
                       n_dsd_1_hop, n_usu_1_hop, n_usu_2_hop, block_b=128):
    """Eval-mode HGNN.forward -> pred_score of shape (B,)."""
    symp = params["symp_embeds"]
    dise = params["dise_embeds"]
    D = symp.shape[-1]
    hd, n1, n2 = n_dsd_1_hop, n_usu_1_hop, n_usu_2_hop

    def nbr_wt(idx):
        # reference _avg_on_real_neighbor: 1/(#nonzero + 1e-8), 0 if none.
        cnt = jnp.sum((idx != 0).astype(jnp.float32), axis=-1, keepdims=True)
        w = 1.0 / (cnt + 1e-8)
        return jnp.where(w >= 1e8, 0.0, w)

    # ---- dsd metapath: gather + neighbor-sum + weight pre-applied here ----
    dsd2_idx = jnp.stack([data[f"dsd_2_{i}"] for i in range(hd)], 0)   # (Hd,B,Nd2)
    dsd2_a = jnp.sum(dise[dsd2_idx], axis=2) * nbr_wt(dsd2_idx)        # (Hd,B,D)
    dsd2_se = symp[jnp.transpose(data["dsd_1"])]                       # (Hd,B,D)
    dsd1_se = dise[label]                                              # (B,D)

    # ---- usu metapath (reference key scheme: usu_3_{i*n1+j}) ----
    usu3_idx = jnp.stack([data[f"usu_3_{i * n1 + j}"]
                          for i in range(n1) for j in range(n2)], 0)   # (n1*n2,B,N3)
    usu3_a = jnp.sum(symp[usu3_idx], axis=2) * nbr_wt(usu3_idx)        # (n1*n2,B,D)
    usu2_se = symp[jnp.transpose(data["usu_1"])]                       # (n1,B,D)
    usu2_idx = jnp.stack([data[f"usu_2_{i}"] for i in range(n1)], 0)   # (n1,B,Nu2)

    wts = jnp.concatenate([nbr_wt(data["dsd_1"])[None],                # dsd level-1
                           nbr_wt(data["usu_1"])[None],                # usu level-1
                           nbr_wt(usu2_idx)], axis=0)                  # (n1+2,B,1)

    # ---- batch tiling ----
    B = dsd1_se.shape[0]
    bt = min(_round_up(block_b, 8), _round_up(B, 8))
    b_pad = _round_up(B, bt)
    grid = (b_pad // bt,)

    dsd2_a, dsd2_se, usu3_a, usu2_se, wts = [
        _pad_batch(x, 1, b_pad) for x in (dsd2_a, dsd2_se, usu3_a, usu2_se, wts)]
    dsd1_se = _pad_batch(dsd1_se, 0, b_pad)

    in_specs = [
        pl.BlockSpec((hd, bt, D),      lambda b: (0, b, 0)),   # dsd2_a
        pl.BlockSpec((hd, bt, D),      lambda b: (0, b, 0)),   # dsd2_se
        pl.BlockSpec((bt, D),          lambda b: (b, 0)),      # dsd1_se
        pl.BlockSpec((n1 * n2, bt, D), lambda b: (0, b, 0)),   # usu3_a
        pl.BlockSpec((n1, bt, D),      lambda b: (0, b, 0)),   # usu2_se
        pl.BlockSpec((n1 + 2, bt, 1),  lambda b: (0, b, 0)),   # wts
        pl.BlockSpec((2 * D, D),       lambda b: (0, 0)),      # w_dsd2 (resident)
        pl.BlockSpec((2 * D, D),       lambda b: (0, 0)),      # w_dsd1
        pl.BlockSpec((D, D),           lambda b: (0, 0)),      # w_usu3
        pl.BlockSpec((2 * D, D),       lambda b: (0, 0)),      # w_usu2
        pl.BlockSpec((D, D),           lambda b: (0, 0)),      # w_usu1
    ]
    out_spec = pl.BlockSpec((bt, _SCORE_LANES), lambda b: (b, 0))

    slab = pl.pallas_call(
        functools.partial(_hgnn_kernel, n1, n2),
        out_shape=jax.ShapeDtypeStruct((b_pad, _SCORE_LANES), jnp.float32),
        grid=grid,
        in_specs=in_specs,
        out_specs=out_spec,
        compiler_params=pltpu.CompilerParams(
            dimension_semantics=("parallel",),
            vmem_limit_bytes=32 * 1024 * 1024),
    )(dsd2_a, dsd2_se, dsd1_se, usu3_a, usu2_se, wts,
      params["w_dsd_2_cat"], params["w_dsd_1_cat"], params["w_usu_3_mxu"],
      params["w_usu_2_cat"], params["w_usu_1_mxu"])
    return slab[:B, 0]


hgnn_forward = jax.jit(
    hgnn_fused_forward,
    static_argnames=("n_dsd_1_hop", "n_usu_1_hop", "n_usu_2_hop", "block_b"))


# ----------------------------------------------------------------------------
# Pure-JAX reference mirroring the PyTorch eval-mode forward (for validation)
# ----------------------------------------------------------------------------
def hgnn_reference(params, data, label, *, n_dsd_1_hop, n_usu_1_hop, n_usu_2_hop):
    symp, dise = params["symp_embeds"], params["dise_embeds"]

    def avg(msg, idx):
        cnt = jnp.sum((idx != 0).astype(jnp.float32), axis=1, keepdims=True)
        w = 1.0 / (cnt + 1e-8)
        w = jnp.where(w >= 1e8, 0.0, w)
        return jnp.sum(msg, axis=1) * w

    def normalize(x):
        n = jnp.sqrt(jnp.sum(x * x, axis=-1, keepdims=True))
        return x / jnp.maximum(n, 1e-12)

    # forward_dsd
    target = dise[label]
    emb_s = symp[data["dsd_1"]]
    outs = []
    for i in range(n_dsd_1_hop):
        idx = data[f"dsd_2_{i}"]
        emb_d = dise[idx]
        se = emb_s[:, i]
        m_s_d = emb_d @ params["w_dsd_2_1"] + (emb_d * se[:, None, :]) @ params["w_dsd_2_2"]
        m_s_s = se @ params["w_dsd_2_1"]
        outs.append(normalize(jnp.tanh(m_s_s + avg(m_s_d, idx)))[:, None])
    emb_s_1 = jnp.concatenate(outs, axis=1)
    m_d_s = emb_s_1 @ params["w_dsd_1_1"] + (emb_s_1 * target[:, None, :]) @ params["w_dsd_1_2"]
    emb_dise = jnp.tanh(avg(m_d_s, data["dsd_1"]) + target @ params["w_dsd_1_1"])

    # forward_usu
    emb_s1_all = symp[data["usu_1"]]
    outs1 = []
    for i in range(n_usu_1_hop):
        se_i = emb_s1_all[:, i]
        outs2 = []
        for j in range(n_usu_2_hop):
            idx = data[f"usu_3_{i * n_usu_1_hop + j}"]
            e3 = symp[idx]
            outs2.append(normalize(jnp.tanh(avg(e3 @ params["w_usu_3"], idx)))[:, None])
        emb_u_2 = jnp.concatenate(outs2, axis=1)
        idx2 = data[f"usu_2_{i}"]
        m_s_u = emb_u_2 @ params["w_usu_2_1"] + (emb_u_2 * se_i[:, None, :]) @ params["w_usu_2_2"]
        m_s_s = se_i @ params["w_usu_2_1"]
        outs1.append(normalize(jnp.tanh(m_s_s + avg(m_s_u, idx2)))[:, None])
    emb_last = jnp.concatenate(outs1, axis=1)
    emb_user = jnp.tanh(avg(emb_last @ params["w_usu_1"], data["usu_1"]))

    return jnp.sum(emb_dise * emb_user, axis=1)


# ----------------------------------------------------------------------------
# Deterministic parameter construction
# ----------------------------------------------------------------------------
def make_params(key, num_symp, num_dise, D):
    ks = jax.random.split(key, 10)

    def lin(k):  # nn.Linear(D, D, bias=False) weight stored transposed: (in, out)
        return jax.random.normal(k, (D, D), jnp.float32) / jnp.sqrt(D)

    symp = 0.1 * jax.random.normal(ks[0], (num_symp + 1, D), jnp.float32)
    dise = 0.1 * jax.random.normal(ks[1], (num_dise + 1, D), jnp.float32)
    symp = symp.at[0].set(0.0)   # padding_idx=0
    dise = dise.at[0].set(0.0)
    p = {
        "symp_embeds": symp, "dise_embeds": dise,
        "w_dsd_2_1": lin(ks[2]), "w_dsd_2_2": lin(ks[3]),
        "w_dsd_1_1": lin(ks[4]), "w_dsd_1_2": lin(ks[5]),
        "w_usu_3":   lin(ks[6]),
        "w_usu_2_1": lin(ks[7]), "w_usu_2_2": lin(ks[8]),
        "w_usu_1":   lin(ks[9]),
    }
    # Pre-fused [W1;W2] gate weights + bf16 MXU copies (one cast, DMA'd once).
    cat = lambda a, b: jnp.concatenate([p[a], p[b]], axis=0).astype(_MXU_DTYPE)
    p["w_dsd_2_cat"] = cat("w_dsd_2_1", "w_dsd_2_2")
    p["w_dsd_1_cat"] = cat("w_dsd_1_1", "w_dsd_1_2")
    p["w_usu_2_cat"] = cat("w_usu_2_1", "w_usu_2_2")
    p["w_usu_3_mxu"] = p["w_usu_3"].astype(_MXU_DTYPE)
    p["w_usu_1_mxu"] = p["w_usu_1"].astype(_MXU_DTYPE)
    return p


if __name__ == "__main__":
    cfg = dict(num_dsd_1_hop=4, num_dsd_2_hop=6,
               num_usu_1_hop=3, num_usu_2_hop=3, num_usu_3_hop=5)
    num_symp, num_dise, D, B = 20, 10, 128, 8

    key = jax.random.PRNGKey(0)
    kp, kd = jax.random.split(key)
    params = make_params(kp, num_symp, num_dise, D)

    # synthetic metapath index data (0 == padding)
    dks = iter(jax.random.split(kd, 32))
    data = {}
    data["dsd_1"] = jax.random.randint(next(dks), (B, cfg["num_dsd_1_hop"]),
                                       0, num_symp + 1)
    for i in range(cfg["num_dsd_1_hop"]):
        data[f"dsd_2_{i}"] = jax.random.randint(
            next(dks), (B, cfg["num_dsd_2_hop"]), 0, num_dise + 1)
    data["usu_1"] = jax.random.randint(next(dks), (B, cfg["num_usu_1_hop"]),
                                       0, num_symp + 1)
    for i in range(cfg["num_usu_1_hop"]):
        data[f"usu_2_{i}"] = jax.random.randint(
            next(dks), (B, cfg["num_usu_2_hop"]), 0, 50)
    usu3_keys = sorted({i * cfg["num_usu_1_hop"] + j
                        for i in range(cfg["num_usu_1_hop"])
                        for j in range(cfg["num_usu_2_hop"])})
    for k in usu3_keys:
        data[f"usu_3_{k}"] = jax.random.randint(
            next(dks), (B, cfg["num_usu_3_hop"]), 0, num_symp + 1)
    label = jax.random.randint(next(dks), (B,), 1, num_dise + 1)

    scores = hgnn_forward(params, data, label,
                          n_dsd_1_hop=cfg["num_dsd_1_hop"],
                          n_usu_1_hop=cfg["num_usu_1_hop"],
                          n_usu_2_hop=cfg["num_usu_2_hop"])
    jax.block_until_ready(scores)
    assert scores.shape == (B,)

    ref = hgnn_reference(params, data, label,
                         n_dsd_1_hop=cfg["num_dsd_1_hop"],
                         n_usu_1_hop=cfg["num_usu_1_hop"],
                         n_usu_2_hop=cfg["num_usu_2_hop"])
    jax.block_until_ready(ref)
    max_err = float(jnp.max(jnp.abs(scores - ref)))
    assert max_err < 6e-2, f"max |kernel - reference| too large: {max_err}"
    print("KERNEL_OK")
</pallas_src>

<mosaic_0001>
module attributes {stable_mosaic.version = 11 : i64} {
  func.func @_hgnn_kernel(%arg0: i32, %arg1: memref<4x8x128xf32, #tpu.memory_space<vmem>>, %arg2: memref<4x8x128xf32, #tpu.memory_space<vmem>>, %arg3: memref<8x128xf32, #tpu.memory_space<vmem>>, %arg4: memref<9x8x128xf32, #tpu.memory_space<vmem>>, %arg5: memref<3x8x128xf32, #tpu.memory_space<vmem>>, %arg6: memref<5x8x1xf32, #tpu.memory_space<vmem>>, %arg7: memref<256x128xbf16, #tpu.memory_space<vmem>>, %arg8: memref<256x128xbf16, #tpu.memory_space<vmem>>, %arg9: memref<128x128xbf16, #tpu.memory_space<vmem>>, %arg10: memref<256x128xbf16, #tpu.memory_space<vmem>>, %arg11: memref<128x128xbf16, #tpu.memory_space<vmem>>, %arg12: memref<8x128xf32, #tpu.memory_space<vmem>>) attributes {dimension_semantics = [#tpu.dimension_semantics<parallel>], iteration_bounds = array<i64: 1>, scalar_prefetch = 0 : i64, scratch_operands = 0 : i64, tpu.core_type = #tpu.core_type<tc>, window_params = [{transform_indices = @transform_0, window_bounds = array<i64: 4, 8, 128>}, {transform_indices = @transform_1, window_bounds = array<i64: 4, 8, 128>}, {transform_indices = @transform_2, window_bounds = array<i64: 8, 128>}, {transform_indices = @transform_3, window_bounds = array<i64: 9, 8, 128>}, {transform_indices = @transform_4, window_bounds = array<i64: 3, 8, 128>}, {transform_indices = @transform_5, window_bounds = array<i64: 5, 8, 1>}, {pipeline_mode = #tpu.pipeline_mode<synchronous>, transform_indices = @transform_6, window_bounds = array<i64: 256, 128>}, {pipeline_mode = #tpu.pipeline_mode<synchronous>, transform_indices = @transform_7, window_bounds = array<i64: 256, 128>}, {pipeline_mode = #tpu.pipeline_mode<synchronous>, transform_indices = @transform_8, window_bounds = array<i64: 128, 128>}, {pipeline_mode = #tpu.pipeline_mode<synchronous>, transform_indices = @transform_9, window_bounds = array<i64: 256, 128>}, {pipeline_mode = #tpu.pipeline_mode<synchronous>, transform_indices = @transform_10, window_bounds = array<i64: 128, 128>}, {transform_indices = @transform_11, window_bounds = array<i64: 8, 128>}]} {
    %c0 = arith.constant 0 : index
    %c0_0 = arith.constant 0 : index
    %c0_1 = arith.constant 0 : index
    %0 = vector.load %arg6[%c0, %c0_0, %c0_1] : memref<5x8x1xf32, #tpu.memory_space<vmem>>, vector<5x8x1xf32>
    %1 = vector.extract_strided_slice %0 {offsets = [0, 0, 0], sizes = [1, 8, 1], strides = [1, 1, 1]} : vector<5x8x1xf32> to vector<1x8x1xf32>
    %2 = vector.shape_cast %1 : vector<1x8x1xf32> to vector<8x1xf32>
    %3 = vector.extract_strided_slice %0 {offsets = [1, 0, 0], sizes = [1, 8, 1], strides = [1, 1, 1]} : vector<5x8x1xf32> to vector<1x8x1xf32>
    %4 = vector.shape_cast %3 : vector<1x8x1xf32> to vector<8x1xf32>
    %5 = vector.extract_strided_slice %0 {offsets = [2, 0, 0], sizes = [3, 8, 1], strides = [1, 1, 1]} : vector<5x8x1xf32> to vector<3x8x1xf32>
    %c0_2 = arith.constant 0 : index
    %c0_3 = arith.constant 0 : index
    %c0_4 = arith.constant 0 : index
    %6 = vector.load %arg1[%c0_2, %c0_3, %c0_4] : memref<4x8x128xf32, #tpu.memory_space<vmem>>, vector<4x8x128xf32>
    %c0_5 = arith.constant 0 : index
    %c0_6 = arith.constant 0 : index
    %c0_7 = arith.constant 0 : index
    %7 = vector.load %arg2[%c0_5, %c0_6, %c0_7] : memref<4x8x128xf32, #tpu.memory_space<vmem>>, vector<4x8x128xf32>
    %8 = arith.addf %6, %7 : vector<4x8x128xf32>
    %9 = vector.shape_cast %8 : vector<4x8x128xf32> to vector<32x128xf32>
    %10 = arith.mulf %6, %7 : vector<4x8x128xf32>
    %11 = vector.shape_cast %10 : vector<4x8x128xf32> to vector<32x128xf32>
    %12 = tpu.concatenate %9, %11 in 1 : vector<32x128xf32>, vector<32x128xf32> -> vector<32x256xf32>
    %13 = arith.truncf %12 : vector<32x256xf32> to vector<32x256xbf16>
    %c0_8 = arith.constant 0 : index
    %c0_9 = arith.constant 0 : index
    %14 = vector.load %arg7[%c0_8, %c0_9] : memref<256x128xbf16, #tpu.memory_space<vmem>>, vector<256x128xbf16>
    %cst = arith.constant dense<0.000000e+00> : vector<32x128xf32>
    %15 = tpu.matmul %13, %14, %cst {dimension_numbers = #tpu.dot_dimension_numbers<[1], [0], [0], [1], [0, 0, 1, 1], [], []>} : vector<32x256xbf16>, vector<256x128xbf16>, vector<32x128xf32> -> vector<32x128xf32>
    %16 = math.tanh %15 : vector<32x128xf32>
    %17 = arith.mulf %16, %16 : vector<32x128xf32>
    %cst_10 = arith.constant dense<0.000000e+00> : vector<32xf32>
    %18 = vector.multi_reduction <add>, %17, %cst_10 [1] : vector<32x128xf32> to vector<32xf32>
    %19 = vector.shape_cast %18 : vector<32xf32> to vector<32x1xf32>
    %cst_11 = arith.constant 1.000000e-24 : f32
    %20 = vector.broadcast %cst_11 : f32 to vector<32x1xf32>
    %21 = arith.maximumf %19, %20 : vector<32x1xf32>
    %22 = math.rsqrt %21 : vector<32x1xf32>
    %23 = vector.broadcast %22 : vector<32x1xf32> to vector<32x128xf32>
    %24 = arith.mulf %16, %23 : vector<32x128xf32>
    %25 = vector.shape_cast %24 : vector<32x128xf32> to vector<4x8x128xf32>
    %cst_12 = arith.constant dense<0.000000e+00> : vector<8x128xf32>
    %26 = vector.multi_reduction <add>, %25, %cst_12 [0] : vector<4x8x128xf32> to vector<8x128xf32>
    %27 = vector.broadcast %2 : vector<8x1xf32> to vector<8x128xf32>
    %28 = arith.mulf %26, %27 : vector<8x128xf32>
    %c0_13 = arith.constant 0 : index
    %c0_14 = arith.constant 0 : index
    %29 = vector.load %arg3[%c0_13, %c0_14] : memref<8x128xf32, #tpu.memory_space<vmem>>, vector<8x128xf32>
    %30 = arith.addf %28, %29 : vector<8x128xf32>
    %31 = arith.mulf %28, %29 : vector<8x128xf32>
    %32 = tpu.concatenate %30, %31 in 1 : vector<8x128xf32>, vector<8x128xf32> -> vector<8x256xf32>
    %33 = arith.truncf %32 : vector<8x256xf32> to vector<8x256xbf16>
    %c0_15 = arith.constant 0 : index
    %c0_16 = arith.constant 0 : index
    %34 = vector.load %arg8[%c0_15, %c0_16] : memref<256x128xbf16, #tpu.memory_space<vmem>>, vector<256x128xbf16>
    %cst_17 = arith.constant dense<0.000000e+00> : vector<8x128xf32>
    %35 = tpu.matmul %33, %34, %cst_17 {dimension_numbers = #tpu.dot_dimension_numbers<[1], [0], [0], [1], [0, 0, 1, 1], [], []>} : vector<8x256xbf16>, vector<256x128xbf16>, vector<8x128xf32> -> vector<8x128xf32>
    %36 = math.tanh %35 : vector<8x128xf32>
    %c0_18 = arith.constant 0 : index
    %c0_19 = arith.constant 0 : index
    %c0_20 = arith.constant 0 : index
    %37 = vector.load %arg4[%c0_18, %c0_19, %c0_20] : memref<9x8x128xf32, #tpu.memory_space<vmem>>, vector<9x8x128xf32>
    %38 = vector.shape_cast %37 : vector<9x8x128xf32> to vector<72x128xf32>
    %39 = arith.truncf %38 : vector<72x128xf32> to vector<72x128xbf16>
    %c0_21 = arith.constant 0 : index
    %c0_22 = arith.constant 0 : index
    %40 = vector.load %arg9[%c0_21, %c0_22] : memref<128x128xbf16, #tpu.memory_space<vmem>>, vector<128x128xbf16>
    %cst_23 = arith.constant dense<0.000000e+00> : vector<72x128xf32>
    %41 = tpu.matmul %39, %40, %cst_23 {dimension_numbers = #tpu.dot_dimension_numbers<[1], [0], [0], [1], [0, 0, 1, 1], [], []>} : vector<72x128xbf16>, vector<128x128xbf16>, vector<72x128xf32> -> vector<72x128xf32>
    %42 = math.tanh %41 : vector<72x128xf32>
    %43 = arith.mulf %42, %42 : vector<72x128xf32>
    %cst_24 = arith.constant dense<0.000000e+00> : vector<72xf32>
    %44 = vector.multi_reduction <add>, %43, %cst_24 [1] : vector<72x128xf32> to vector<72xf32>
    %45 = vector.shape_cast %44 : vector<72xf32> to vector<72x1xf32>
    %cst_25 = arith.constant 1.000000e-24 : f32
    %46 = vector.broadcast %cst_25 : f32 to vector<72x1xf32>
    %47 = arith.maximumf %45, %46 : vector<72x1xf32>
    %48 = math.rsqrt %47 : vector<72x1xf32>
    %49 = vector.broadcast %48 : vector<72x1xf32> to vector<72x128xf32>
    %50 = arith.mulf %42, %49 : vector<72x128xf32>
    %51 = vector.shape_cast %50 : vector<72x128xf32> to vector<9x8x128xf32>
    %52 = vector.shape_cast %51 : vector<9x8x128xf32> to vector<3x3x8x128xf32>
    %cst_26 = arith.constant dense<0.000000e+00> : vector<3x8x128xf32>
    %53 = vector.multi_reduction <add>, %52, %cst_26 [1] : vector<3x3x8x128xf32> to vector<3x8x128xf32>
    %54 = vector.broadcast %5 : vector<3x8x1xf32> to vector<3x8x128xf32>
    %55 = arith.mulf %53, %54 : vector<3x8x128xf32>
    %c0_27 = arith.constant 0 : index
    %c0_28 = arith.constant 0 : index
    %c0_29 = arith.constant 0 : index
    %56 = vector.load %arg5[%c0_27, %c0_28, %c0_29] : memref<3x8x128xf32, #tpu.memory_space<vmem>>, vector<3x8x128xf32>
    %57 = arith.addf %55, %56 : vector<3x8x128xf32>
    %58 = vector.shape_cast %57 : vector<3x8x128xf32> to vector<24x128xf32>
    %59 = arith.mulf %55, %56 : vector<3x8x128xf32>
    %60 = vector.shape_cast %59 : vector<3x8x128xf32> to vector<24x128xf32>
    %61 = tpu.concatenate %58, %60 in 1 : vector<24x128xf32>, vector<24x128xf32> -> vector<24x256xf32>
    %62 = arith.truncf %61 : vector<24x256xf32> to vector<24x256xbf16>
    %c0_30 = arith.constant 0 : index
    %c0_31 = arith.constant 0 : index
    %63 = vector.load %arg10[%c0_30, %c0_31] : memref<256x128xbf16, #tpu.memory_space<vmem>>, vector<256x128xbf16>
    %cst_32 = arith.constant dense<0.000000e+00> : vector<24x128xf32>
    %64 = tpu.matmul %62, %63, %cst_32 {dimension_numbers = #tpu.dot_dimension_numbers<[1], [0], [0], [1], [0, 0, 1, 1], [], []>} : vector<24x256xbf16>, vector<256x128xbf16>, vector<24x128xf32> -> vector<24x128xf32>
    %65 = math.tanh %64 : vector<24x128xf32>
    %66 = arith.mulf %65, %65 : vector<24x128xf32>
    %cst_33 = arith.constant dense<0.000000e+00> : vector<24xf32>
    %67 = vector.multi_reduction <add>, %66, %cst_33 [1] : vector<24x128xf32> to vector<24xf32>
    %68 = vector.shape_cast %67 : vector<24xf32> to vector<24x1xf32>
    %cst_34 = arith.constant 1.000000e-24 : f32
    %69 = vector.broadcast %cst_34 : f32 to vector<24x1xf32>
    %70 = arith.maximumf %68, %69 : vector<24x1xf32>
    %71 = math.rsqrt %70 : vector<24x1xf32>
    %72 = vector.broadcast %71 : vector<24x1xf32> to vector<24x128xf32>
    %73 = arith.mulf %65, %72 : vector<24x128xf32>
    %74 = vector.shape_cast %73 : vector<24x128xf32> to vector<3x8x128xf32>
    %cst_35 = arith.constant dense<0.000000e+00> : vector<8x128xf32>
    %75 = vector.multi_reduction <add>, %74, %cst_35 [0] : vector<3x8x128xf32> to vector<8x128xf32>
    %76 = vector.broadcast %4 : vector<8x1xf32> to vector<8x128xf32>
    %77 = arith.mulf %75, %76 : vector<8x128xf32>
    %78 = arith.truncf %77 : vector<8x128xf32> to vector<8x128xbf16>
    %c0_36 = arith.constant 0 : index
    %c0_37 = arith.constant 0 : index
    %79 = vector.load %arg11[%c0_36, %c0_37] : memref<128x128xbf16, #tpu.memory_space<vmem>>, vector<128x128xbf16>
    %cst_38 = arith.constant dense<0.000000e+00> : vector<8x128xf32>
    %80 = tpu.matmul %78, %79, %cst_38 {dimension_numbers = #tpu.dot_dimension_numbers<[1], [0], [0], [1], [0, 0, 1, 1], [], []>} : vector<8x128xbf16>, vector<128x128xbf16>, vector<8x128xf32> -> vector<8x128xf32>
    %81 = math.tanh %80 : vector<8x128xf32>
    %82 = arith.mulf %36, %81 : vector<8x128xf32>
    %cst_39 = arith.constant dense<0.000000e+00> : vector<8xf32>
    %83 = vector.multi_reduction <add>, %82, %cst_39 [1] : vector<8x128xf32> to vector<8xf32>
    %84 = vector.shape_cast %83 : vector<8xf32> to vector<8x1xf32>
    %85 = vector.shape_cast %84 : vector<8x1xf32> to vector<8x1xf32>
    %86 = vector.broadcast %85 : vector<8x1xf32> to vector<8x128xf32>
    %c0_40 = arith.constant 0 : index
    %c0_41 = arith.constant 0 : index
    %87 = vector.load %arg12[%c0_40, %c0_41] : memref<8x128xf32, #tpu.memory_space<vmem>>, vector<8x128xf32>
    tpu.vector_store %arg12[%c0_40, %c0_41], %86 {strides = array<i32>} : memref<8x128xf32, #tpu.memory_space<vmem>>, vector<8x128xf32>,
    return
  }
  func.func @transform_0(%arg0: i32) -> (i32, i32, i32) {
    %c0_i32 = arith.constant 0 : i32
    %c0_i32_0 = arith.constant 0 : i32
    %c0_i32_1 = arith.constant 0 : i32
    return %c0_i32, %arg0, %c0_i32_0 : i32, i32, i32
  }
  func.func @transform_1(%arg0: i32) -> (i32, i32, i32) {
    %c0_i32 = arith.constant 0 : i32
    %c0_i32_0 = arith.constant 0 : i32
    %c0_i32_1 = arith.constant 0 : i32
    return %c0_i32, %arg0, %c0_i32_0 : i32, i32, i32
  }
  func.func @transform_2(%arg0: i32) -> (i32, i32) {
    %c0_i32 = arith.constant 0 : i32
    %c0_i32_0 = arith.constant 0 : i32
    return %arg0, %c0_i32 : i32, i32
  }
  func.func @transform_3(%arg0: i32) -> (i32, i32, i32) {
    %c0_i32 = arith.constant 0 : i32
    %c0_i32_0 = arith.constant 0 : i32
    %c0_i32_1 = arith.constant 0 : i32
    return %c0_i32, %arg0, %c0_i32_0 : i32, i32, i32
  }
  func.func @transform_4(%arg0: i32) -> (i32, i32, i32) {
    %c0_i32 = arith.constant 0 : i32
    %c0_i32_0 = arith.constant 0 : i32
    %c0_i32_1 = arith.constant 0 : i32
    return %c0_i32, %arg0, %c0_i32_0 : i32, i32, i32
  }
  func.func @transform_5(%arg0: i32) -> (i32, i32, i32) {
    %c0_i32 = arith.constant 0 : i32
    %c0_i32_0 = arith.constant 0 : i32
    %c0_i32_1 = arith.constant 0 : i32
    return %c0_i32, %arg0, %c0_i32_0 : i32, i32, i32
  }
  func.func @transform_6(%arg0: i32) -> (i32, i32) {
    %c0_i32 = arith.constant 0 : i32
    %c0_i32_0 = arith.constant 0 : i32
    %c0_i32_1 = arith.constant 0 : i32
    return %c0_i32, %c0_i32_0 : i32, i32
  }
  func.func @transform_7(%arg0: i32) -> (i32, i32) {
    %c0_i32 = arith.constant 0 : i32
    %c0_i32_0 = arith.constant 0 : i32
    %c0_i32_1 = arith.constant 0 : i32
    return %c0_i32, %c0_i32_0 : i32, i32
  }
  func.func @transform_8(%arg0: i32) -> (i32, i32) {
    %c0_i32 = arith.constant 0 : i32
    %c0_i32_0 = arith.constant 0 : i32
    %c0_i32_1 = arith.constant 0 : i32
    return %c0_i32, %c0_i32_0 : i32, i32
  }
  func.func @transform_9(%arg0: i32) -> (i32, i32) {
    %c0_i32 = arith.constant 0 : i32
    %c0_i32_0 = arith.constant 0 : i32
    %c0_i32_1 = arith.constant 0 : i32
    return %c0_i32, %c0_i32_0 : i32, i32
  }
  func.func @transform_10(%arg0: i32) -> (i32, i32) {
    %c0_i32 = arith.constant 0 : i32
    %c0_i32_0 = arith.constant 0 : i32
    %c0_i32_1 = arith.constant 0 : i32
    return %c0_i32, %c0_i32_0 : i32, i32
  }
  func.func @transform_11(%arg0: i32) -> (i32, i32) {
    %c0_i32 = arith.constant 0 : i32
    %c0_i32_0 = arith.constant 0 : i32
    return %arg0, %c0_i32 : i32, i32
  }
}

</mosaic_0001>

<llo_original>
// kernel: hgnn_fused_forward.1
$region0: #{hgnn_fused_forward.1}
  #allocation0 [shape = 'u32[]', space=smem, size = 0x4, offset = 0x4, fixed_abs, tag = 'smem constant byte address 0x4 - core index']
  #allocation1 [shape = 'u32[144,128]{1,0:T(1,128)}', space=vmem, size = 0x12000, scoped, tag = 'internal scratch']
  %s0 = inlined_call_operand.vmem [shape: f32[4,8,128], index: 0, kind: input, shape index: {}]
  %s1 = inlined_call_operand.vmem [shape: f32[4,8,128], index: 1, kind: input, shape index: {}]
  %s2 = inlined_call_operand.vmem [shape: f32[8,128], index: 2, kind: input, shape index: {}]
  %s3 = inlined_call_operand.vmem [shape: f32[9,8,128], index: 3, kind: input, shape index: {}]
  %s4 = inlined_call_operand.vmem [shape: f32[3,8,128], index: 4, kind: input, shape index: {}]
  %s5 = inlined_call_operand.vmem [shape: f32[5,8,1], index: 5, kind: input, shape index: {}]
  %s6 = inlined_call_operand.vmem [shape: bf16[256,128], index: 6, kind: input, shape index: {}]
  %s7 = inlined_call_operand.vmem [shape: bf16[256,128], index: 7, kind: input, shape index: {}]
  %s8 = inlined_call_operand.vmem [shape: bf16[128,128], index: 8, kind: input, shape index: {}]
  %s9 = inlined_call_operand.vmem [shape: bf16[256,128], index: 9, kind: input, shape index: {}]
  %s10 = inlined_call_operand.vmem [shape: bf16[128,128], index: 10, kind: input, shape index: {}]
  %s11 = inlined_call_operand.vmem [shape: f32[8,128], index: 11, kind: output, shape index: {}]
  %s12 = sld [smem:[#allocation0]]
  $region54: #{hgnn_fused_forward.1} parent=0
    _
  %s14 = ssub.s32 1, %s12
  %s15 = scalar_select 0, %s14, %s12
  // Predicated region
  $region2: #{hgnn_fused_forward.1} parent=0 // pred_check
    _
  $region3: #{hgnn_fused_forward.1} parent=0 // pred_check_branch
    %17 = sbr.rel (0) target = $region5
  $region4: #{hgnn_fused_forward.1} parent=0 // pred_region
    _
  $region5: #{hgnn_fused_forward.1} parent=0 // pred_fallthru
    _
  // Predicated region
  $region6: #{hgnn_fused_forward.1} parent=0 // pred_check
    _
  $region7: #{hgnn_fused_forward.1} parent=0 // pred_check_branch
    %19 = sbr.rel (0) target = $region9
  $region8: #{hgnn_fused_forward.1} parent=0 // pred_region
    _
  $region9: #{hgnn_fused_forward.1} parent=0 // pred_fallthru
    _
  // Predicated region
  $region10: #{hgnn_fused_forward.1} parent=0 // pred_check
    _
  $region11: #{hgnn_fused_forward.1} parent=0 // pred_check_branch
    %21 = sbr.rel (0) target = $region13
  $region12: #{hgnn_fused_forward.1} parent=0 // pred_region
    _
  $region13: #{hgnn_fused_forward.1} parent=0 // pred_fallthru
    _
  // Predicated region
  $region14: #{hgnn_fused_forward.1} parent=0 // pred_check
    _
  $region15: #{hgnn_fused_forward.1} parent=0 // pred_check_branch
    %23 = sbr.rel (0) target = $region17
  $region16: #{hgnn_fused_forward.1} parent=0 // pred_region
    _
  $region17: #{hgnn_fused_forward.1} parent=0 // pred_fallthru
    _
  // Predicated region
  $region18: #{hgnn_fused_forward.1} parent=0 // pred_check
    _
  $region19: #{hgnn_fused_forward.1} parent=0 // pred_check_branch
    %25 = sbr.rel (0) target = $region21
  $region20: #{hgnn_fused_forward.1} parent=0 // pred_region
    _
  $region21: #{hgnn_fused_forward.1} parent=0 // pred_fallthru
    _
  // Predicated region
  $region22: #{hgnn_fused_forward.1} parent=0 // pred_check
    _
  $region23: #{hgnn_fused_forward.1} parent=0 // pred_check_branch
    %27 = sbr.rel (0) target = $region25
  $region24: #{hgnn_fused_forward.1} parent=0 // pred_region
    _
  $region25: #{hgnn_fused_forward.1} parent=0 // pred_fallthru
    _
  // Predicated region
  $region26: #{hgnn_fused_forward.1} parent=0 // pred_check
    _
  $region27: #{hgnn_fused_forward.1} parent=0 // pred_check_branch
    %29 = sbr.rel (0) target = $region29
  $region28: #{hgnn_fused_forward.1} parent=0 // pred_region
    _
  $region29: #{hgnn_fused_forward.1} parent=0 // pred_fallthru
    _
  // Predicated region
  $region30: #{hgnn_fused_forward.1} parent=0 // pred_check
    _
  $region31: #{hgnn_fused_forward.1} parent=0 // pred_check_branch
    %31 = sbr.rel (0) target = $region33
  $region32: #{hgnn_fused_forward.1} parent=0 // pred_region
    _
  $region33: #{hgnn_fused_forward.1} parent=0 // pred_fallthru
    _
  // Predicated region
  $region34: #{hgnn_fused_forward.1} parent=0 // pred_check
    _
  $region35: #{hgnn_fused_forward.1} parent=0 // pred_check_branch
    %33 = sbr.rel (0) target = $region37
  $region36: #{hgnn_fused_forward.1} parent=0 // pred_region
    _
  $region37: #{hgnn_fused_forward.1} parent=0 // pred_fallthru
    _
  // Predicated region
  $region38: #{hgnn_fused_forward.1} parent=0 // pred_check
    _
  $region39: #{hgnn_fused_forward.1} parent=0 // pred_check_branch
    %35 = sbr.rel (0) target = $region41
  $region40: #{hgnn_fused_forward.1} parent=0 // pred_region
    _
  $region41: #{hgnn_fused_forward.1} parent=0 // pred_fallthru
    _
  // Predicated region
  $region42: #{hgnn_fused_forward.1} parent=0 // pred_check
    _
  $region43: #{hgnn_fused_forward.1} parent=0 // pred_check_branch
    %37 = sbr.rel (0) target = $region45
  $region44: #{hgnn_fused_forward.1} parent=0 // pred_region
    _
  $region45: #{hgnn_fused_forward.1} parent=0 // pred_fallthru
    _
  %v39 = vld [vmem:[%s5] sm:$0xff]
  %v40 = vld [vmem:[%s5 + $0x8] sm:$0xff]
  %v41 = vld [vmem:[%s5 + $0x10] sm:$0xff]
  %v42 = vld [vmem:[%s5 + $0x18] sm:$0xff]
  %v43 = vld [vmem:[%s5 + $0x20] sm:$0xff]
  %v44 = vld [vmem:[%s0] sm:$0xff]
  %v45 = vld [vmem:[%s0 + $0x8] sm:$0xff]
  %v46 = vld [vmem:[%s0 + $0x10] sm:$0xff]
  %v47 = vld [vmem:[%s0 + $0x18] sm:$0xff]
  %v48 = vld [vmem:[%s1] sm:$0xff]
  %v49 = vld [vmem:[%s1 + $0x8] sm:$0xff]
  %v50 = vld [vmem:[%s1 + $0x10] sm:$0xff]
  %v51 = vld [vmem:[%s1 + $0x18] sm:$0xff]
  %v52 = vadd.f32 %v44, %v48
  %v53 = vadd.f32 %v45, %v49
  %v54 = vadd.f32 %v46, %v50
  %v55 = vadd.f32 %v47, %v51
  %v56 = vmul.f32 %v44, %v48
  %v57 = vmul.f32 %v45, %v49
  %v58 = vmul.f32 %v46, %v50
  %v59 = vmul.f32 %v47, %v51
  %v60 = vpack.c.bf16 %v53, %v52
  %v61 = vpack.c.bf16 %v57, %v56
  %v62 = vpack.c.bf16 %v55, %v54
  %v63 = vpack.c.bf16 %v59, %v58
  %v64 = vld [vmem:[%s6] sm:$0xf]
  %v65 = vld [vmem:[%s6 + $0x4] sm:$0xf]
  %v66 = vld [vmem:[%s6 + $0x8] sm:$0xf]
  %v67 = vld [vmem:[%s6 + $0xc] sm:$0xf]
  %v68 = vld [vmem:[%s6 + $0x10] sm:$0xf]
  %v69 = vld [vmem:[%s6 + $0x14] sm:$0xf]
  %v70 = vld [vmem:[%s6 + $0x18] sm:$0xf]
  %v71 = vld [vmem:[%s6 + $0x1c] sm:$0xf]
  %v72 = vld [vmem:[%s6 + $0x20] sm:$0xf]
  %v73 = vld [vmem:[%s6 + $0x24] sm:$0xf]
  %v74 = vld [vmem:[%s6 + $0x28] sm:$0xf]
  %v75 = vld [vmem:[%s6 + $0x2c] sm:$0xf]
  %v76 = vld [vmem:[%s6 + $0x30] sm:$0xf]
  %v77 = vld [vmem:[%s6 + $0x34] sm:$0xf]
  %v78 = vld [vmem:[%s6 + $0x38] sm:$0xf]
  %v79 = vld [vmem:[%s6 + $0x3c] sm:$0xf]
  %v80 = vld [vmem:[%s6 + $0x40] sm:$0xf]
  %v81 = vld [vmem:[%s6 + $0x44] sm:$0xf]
  %v82 = vld [vmem:[%s6 + $0x48] sm:$0xf]
  %v83 = vld [vmem:[%s6 + $0x4c] sm:$0xf]
  %v84 = vld [vmem:[%s6 + $0x50] sm:$0xf]
  %v85 = vld [vmem:[%s6 + $0x54] sm:$0xf]
  %v86 = vld [vmem:[%s6 + $0x58] sm:$0xf]
  %v87 = vld [vmem:[%s6 + $0x5c] sm:$0xf]
  %v88 = vld [vmem:[%s6 + $0x60] sm:$0xf]
  %v89 = vld [vmem:[%s6 + $0x64] sm:$0xf]
  %v90 = vld [vmem:[%s6 + $0x68] sm:$0xf]
  %v91 = vld [vmem:[%s6 + $0x6c] sm:$0xf]
  %v92 = vld [vmem:[%s6 + $0x70] sm:$0xf]
  %v93 = vld [vmem:[%s6 + $0x74] sm:$0xf]
  %v94 = vld [vmem:[%s6 + $0x78] sm:$0xf]
  %v95 = vld [vmem:[%s6 + $0x7c] sm:$0xf]
  %v128 = vunpack.c.l.b16 %v64
  %v129 = vunpack.c.l.b16 %v65
  %v130 = vunpack.c.l.b16 %v66
  %v131 = vunpack.c.l.b16 %v67
  %v132 = vunpack.c.l.b16 %v68
  %v133 = vunpack.c.l.b16 %v69
  %v134 = vunpack.c.l.b16 %v70
  %v135 = vunpack.c.l.b16 %v71
  %v136 = vunpack.c.l.b16 %v72
  %v137 = vunpack.c.l.b16 %v73
  %v138 = vunpack.c.l.b16 %v74
  %v139 = vunpack.c.l.b16 %v75
  %v140 = vunpack.c.l.b16 %v76
  %v141 = vunpack.c.l.b16 %v77
  %v142 = vunpack.c.l.b16 %v78
  %v143 = vunpack.c.l.b16 %v79
  %v144 = vunpack.c.l.b16 %v80
  %v145 = vunpack.c.l.b16 %v81
  %v146 = vunpack.c.l.b16 %v82
  %v147 = vunpack.c.l.b16 %v83
  %v148 = vunpack.c.l.b16 %v84
  %v149 = vunpack.c.l.b16 %v85
  %v150 = vunpack.c.l.b16 %v86
  %v151 = vunpack.c.l.b16 %v87
  %v152 = vunpack.c.l.b16 %v88
  %v153 = vunpack.c.l.b16 %v89
  %v154 = vunpack.c.l.b16 %v90
  %v155 = vunpack.c.l.b16 %v91
  %v156 = vunpack.c.l.b16 %v92
  %v157 = vunpack.c.l.b16 %v93
  %v158 = vunpack.c.l.b16 %v94
  %v159 = vunpack.c.l.b16 %v95
  %v160 = vpack.c.b16 %v129, %v128
  %v161 = vpack.c.b16 %v131, %v130
  %v162 = vpack.c.b16 %v133, %v132
  %v163 = vpack.c.b16 %v135, %v134
  %v164 = vpack.c.b16 %v137, %v136
  %v165 = vpack.c.b16 %v139, %v138
  %v166 = vpack.c.b16 %v141, %v140
  %v167 = vpack.c.b16 %v143, %v142
  %v168 = vpack.c.b16 %v145, %v144
  %v169 = vpack.c.b16 %v147, %v146
  %v170 = vpack.c.b16 %v149, %v148
  %v171 = vpack.c.b16 %v151, %v150
  %v172 = vpack.c.b16 %v153, %v152
  %v173 = vpack.c.b16 %v155, %v154
  %v174 = vpack.c.b16 %v157, %v156
  %v175 = vpack.c.b16 %v159, %v158
  %192 = vmatprep.subr.bf16.mxu0 0
  %193 = vmatpush1.bf16.msra.mxu0 %v167
  %194 = vmatprep.subr.bf16.mxu0 0
  %195 = vmatpush1.bf16.msra.mxu0 %v166
  %196 = vmatprep.subr.bf16.mxu0 0
  %197 = vmatpush1.bf16.msra.mxu0 %v165
  %198 = vmatprep.subr.bf16.mxu0 0
  %199 = vmatpush1.bf16.msra.mxu0 %v164
  %200 = vmatprep.subr.bf16.mxu0 0
  %201 = vmatpush1.bf16.msra.mxu0 %v163
  %202 = vmatprep.subr.bf16.mxu0 0
  %203 = vmatpush1.bf16.msra.mxu0 %v162
  %204 = vmatprep.subr.bf16.mxu0 0
  %205 = vmatpush1.bf16.msra.mxu0 %v161
  %206 = vmatprep.subr.bf16.mxu0 0
  %207 = vmatpush1.bf16.msra.mxu0 %v160
  %208 = vmatprep.subr.bf16.mxu0 0
  %209 = vmatpush2.bf16.msra.mxu0 %v175
  %210 = vmatprep.subr.bf16.mxu0 0
  %211 = vmatpush2.bf16.msra.mxu0 %v174
  %212 = vmatprep.subr.bf16.mxu0 0
  %213 = vmatpush2.bf16.msra.mxu0 %v173
  %214 = vmatprep.subr.bf16.mxu0 0
  %215 = vmatpush2.bf16.msra.mxu0 %v172
  %216 = vmatprep.subr.bf16.mxu0 0
  %217 = vmatpush2.bf16.msra.mxu0 %v171
  %218 = vmatprep.subr.bf16.mxu0 0
  %219 = vmatpush2.bf16.msra.mxu0 %v170
  %220 = vmatprep.subr.bf16.mxu0 0
  %221 = vmatpush2.bf16.msra.mxu0 %v169
  %222 = vmatprep.subr.bf16.mxu0 0
  %223 = vmatpush2.bf16.msra.mxu0 %v168
  %224 = vmatprep.mubr.bf16.mxu0 %v61
  %225 = vmatmul.mubr.bf16.gmra.mxu0 %v60
  %v226 = vpop.f32.mrf.mxu0
  %v227 = vadd.f32 0.0, %v226
  %v228 = vpop.f32.mrf.mxu0
  %v229 = vpop.f32.mrf.mxu0
  %v230 = vadd.f32 0.0, %v229
  %v231 = vpop.f32.mrf.mxu0
  %232 = vmatprep.mubr.bf16.mxu0 %v63
  %233 = vmatmul.mubr.bf16.gmra.mxu0 %v62
  %v234 = vpop.f32.mrf.mxu0
  %v235 = vadd.f32 0.0, %v234
  %v236 = vpop.f32.mrf.mxu0
  %v237 = vpop.f32.mrf.mxu0
  %v238 = vadd.f32 0.0, %v237
  %v239 = vpop.f32.mrf.mxu0
  %240 = vdwg.mxu0
  %v241 = vtanh.pop %v227
  %v242 = vtanh.pop %v230
  %v243 = vtanh.pop %v235
  %v244 = vtanh.pop %v238
  %v245 = vmul.f32 %v241, %v241
  %v246 = vmul.f32 %v242, %v242
  %v247 = vmul.f32 %v243, %v243
  %v248 = vmul.f32 %v244, %v244
  %249 = vadd.xlane.f32.xlu0 %v245
  %v250 = vpop.xlane.xlu0 %249
  %251 = vadd.xlane.f32.xlu0 %v246
  %v252 = vpop.xlane.xlu0 %251
  %253 = vadd.xlane.f32.xlu0 %v247
  %v254 = vpop.xlane.xlu0 %253
  %255 = vadd.xlane.f32.xlu0 %v248
  %v256 = vpop.xlane.xlu0 %255
  %v257 = vmax.f32 %v250, 1e-24
  %v258 = vmax.f32 %v252, 1e-24
  %v259 = vmax.f32 %v254, 1e-24
  %v260 = vmax.f32 %v256, 1e-24
  %v261 = vrsqrt.pop %v257
  %v262 = vrsqrt.pop %v258
  %v263 = vrsqrt.pop %v259
  %v264 = vrsqrt.pop %v260
  %v265 = vmul.f32 %v241, %v261
  %v266 = vmul.f32 %v242, %v262
  %v267 = vmul.f32 %v243, %v263
  %v268 = vmul.f32 %v244, %v264
  %v269 = vadd.f32 %v265, %v266
  %v270 = vadd.f32 %v269, %v267
  %v271 = vadd.f32 %v270, %v268
  %273 = vset.pattern.permute.xlu0 0
  %274 = vperm.xlu0 %273, %v39
  %v275 = vpop.permute.xlu0 %274
  %v277 = vmul.f32 %v271, %v275
  %v278 = vld [vmem:[%s2] sm:$0xff]
  %v279 = vadd.f32 %v277, %v278
  %v280 = vmul.f32 %v277, %v278
  %v281 = vpack.c.bf16 %v279, %v279
  %v282 = vpack.c.bf16 %v280, %v280
  %v283 = vld [vmem:[%s7] sm:$0xf]
  %v284 = vld [vmem:[%s7 + $0x4] sm:$0xf]
  %v285 = vld [vmem:[%s7 + $0x8] sm:$0xf]
  %v286 = vld [vmem:[%s7 + $0xc] sm:$0xf]
  %v287 = vld [vmem:[%s7 + $0x10] sm:$0xf]
  %v288 = vld [vmem:[%s7 + $0x14] sm:$0xf]
  %v289 = vld [vmem:[%s7 + $0x18] sm:$0xf]
  %v290 = vld [vmem:[%s7 + $0x1c] sm:$0xf]
  %v291 = vld [vmem:[%s7 + $0x20] sm:$0xf]
  %v292 = vld [vmem:[%s7 + $0x24] sm:$0xf]
  %v293 = vld [vmem:[%s7 + $0x28] sm:$0xf]
  %v294 = vld [vmem:[%s7 + $0x2c] sm:$0xf]
  %v295 = vld [vmem:[%s7 + $0x30] sm:$0xf]
  %v296 = vld [vmem:[%s7 + $0x34] sm:$0xf]
  %v297 = vld [vmem:[%s7 + $0x38] sm:$0xf]
  %v298 = vld [vmem:[%s7 + $0x3c] sm:$0xf]
  %v299 = vld [vmem:[%s7 + $0x40] sm:$0xf]
  %v300 = vld [vmem:[%s7 + $0x44] sm:$0xf]
  %v301 = vld [vmem:[%s7 + $0x48] sm:$0xf]
  %v302 = vld [vmem:[%s7 + $0x4c] sm:$0xf]
  %v303 = vld [vmem:[%s7 + $0x50] sm:$0xf]
  %v304 = vld [vmem:[%s7 + $0x54] sm:$0xf]
  %v305 = vld [vmem:[%s7 + $0x58] sm:$0xf]
  %v306 = vld [vmem:[%s7 + $0x5c] sm:$0xf]
  %v307 = vld [vmem:[%s7 + $0x60] sm:$0xf]
  %v308 = vld [vmem:[%s7 + $0x64] sm:$0xf]
  %v309 = vld [vmem:[%s7 + $0x68] sm:$0xf]
  %v310 = vld [vmem:[%s7 + $0x6c] sm:$0xf]
  %v311 = vld [vmem:[%s7 + $0x70] sm:$0xf]
  %v312 = vld [vmem:[%s7 + $0x74] sm:$0xf]
  %v313 = vld [vmem:[%s7 + $0x78] sm:$0xf]
  %v314 = vld [vmem:[%s7 + $0x7c] sm:$0xf]
  %v347 = vunpack.c.l.b16 %v283
  %v348 = vunpack.c.l.b16 %v284
  %v349 = vunpack.c.l.b16 %v285
  %v350 = vunpack.c.l.b16 %v286
  %v351 = vunpack.c.l.b16 %v287
  %v352 = vunpack.c.l.b16 %v288
  %v353 = vunpack.c.l.b16 %v289
  %v354 = vunpack.c.l.b16 %v290
  %v355 = vunpack.c.l.b16 %v291
  %v356 = vunpack.c.l.b16 %v292
  %v357 = vunpack.c.l.b16 %v293
  %v358 = vunpack.c.l.b16 %v294
  %v359 = vunpack.c.l.b16 %v295
  %v360 = vunpack.c.l.b16 %v296
  %v361 = vunpack.c.l.b16 %v297
  %v362 = vunpack.c.l.b16 %v298
  %v363 = vunpack.c.l.b16 %v299
  %v364 = vunpack.c.l.b16 %v300
  %v365 = vunpack.c.l.b16 %v301
  %v366 = vunpack.c.l.b16 %v302
  %v367 = vunpack.c.l.b16 %v303
  %v368 = vunpack.c.l.b16 %v304
  %v369 = vunpack.c.l.b16 %v305
  %v370 = vunpack.c.l.b16 %v306
  %v371 = vunpack.c.l.b16 %v307
  %v372 = vunpack.c.l.b16 %v308
  %v373 = vunpack.c.l.b16 %v309
  %v374 = vunpack.c.l.b16 %v310
  %v375 = vunpack.c.l.b16 %v311
  %v376 = vunpack.c.l.b16 %v312
  %v377 = vunpack.c.l.b16 %v313
  %v378 = vunpack.c.l.b16 %v314
  %v379 = vpack.c.b16 %v348, %v347
  %v380 = vpack.c.b16 %v350, %v349
  %v381 = vpack.c.b16 %v352, %v351
  %v382 = vpack.c.b16 %v354, %v353
  %v383 = vpack.c.b16 %v356, %v355
  %v384 = vpack.c.b16 %v358, %v357
  %v385 = vpack.c.b16 %v360, %v359
  %v386 = vpack.c.b16 %v362, %v361
  %v387 = vpack.c.b16 %v364, %v363
  %v388 = vpack.c.b16 %v366, %v365
  %v389 = vpack.c.b16 %v368, %v367
  %v390 = vpack.c.b16 %v370, %v369
  %v391 = vpack.c.b16 %v372, %v371
  %v392 = vpack.c.b16 %v374, %v373
  %v393 = vpack.c.b16 %v376, %v375
  %v394 = vpack.c.b16 %v378, %v377
  %411 = vmatprep.subr.bf16.mxu0 0
  %412 = vmatpush1.bf16.msra.mxu0 %v386
  %413 = vmatprep.subr.bf16.mxu0 0
  %414 = vmatpush1.bf16.msra.mxu0 %v385
  %415 = vmatprep.subr.bf16.mxu0 0
  %416 = vmatpush1.bf16.msra.mxu0 %v384
  %417 = vmatprep.subr.bf16.mxu0 0
  %418 = vmatpush1.bf16.msra.mxu0 %v383
  %419 = vmatprep.subr.bf16.mxu0 0
  %420 = vmatpush1.bf16.msra.mxu0 %v382
  %421 = vmatprep.subr.bf16.mxu0 0
  %422 = vmatpush1.bf16.msra.mxu0 %v381
  %423 = vmatprep.subr.bf16.mxu0 0
  %424 = vmatpush1.bf16.msra.mxu0 %v380
  %425 = vmatprep.subr.bf16.mxu0 0
  %426 = vmatpush1.bf16.msra.mxu0 %v379
  %427 = vmatprep.subr.bf16.mxu0 0
  %428 = vmatpush2.bf16.msra.mxu0 %v394
  %429 = vmatprep.subr.bf16.mxu0 0
  %430 = vmatpush2.bf16.msra.mxu0 %v393
  %431 = vmatprep.subr.bf16.mxu0 0
  %432 = vmatpush2.bf16.msra.mxu0 %v392
  %433 = vmatprep.subr.bf16.mxu0 0
  %434 = vmatpush2.bf16.msra.mxu0 %v391
  %435 = vmatprep.subr.bf16.mxu0 0
  %436 = vmatpush2.bf16.msra.mxu0 %v390
  %437 = vmatprep.subr.bf16.mxu0 0
  %438 = vmatpush2.bf16.msra.mxu0 %v389
  %439 = vmatprep.subr.bf16.mxu0 0
  %440 = vmatpush2.bf16.msra.mxu0 %v388
  %441 = vmatprep.subr.bf16.mxu0 0
  %442 = vmatpush2.bf16.msra.mxu0 %v387
  %443 = vmatprep.mubr.bf16.mxu0 %v282
  %444 = vmatmul.mubr.bf16.gmra.mxu0 %v281
  %v445 = vpop.f32.mrf.mxu0
  %v446 = vadd.f32 0.0, %v445
  %v447 = vpop.f32.mrf.mxu0
  %v448 = vpop.f32.mrf.mxu0
  %v449 = vpop.f32.mrf.mxu0
  %450 = vdwg.mxu0
  %v451 = vtanh.pop %v446
  %v452 = vld [vmem:[%s3] sm:$0xff]
  %v453 = vld [vmem:[%s3 + $0x8] sm:$0xff]
  %v454 = vld [vmem:[%s3 + $0x10] sm:$0xff]
  %v455 = vld [vmem:[%s3 + $0x18] sm:$0xff]
  %v456 = vld [vmem:[%s3 + $0x20] sm:$0xff]
  %v457 = vld [vmem:[%s3 + $0x28] sm:$0xff]
  %v458 = vld [vmem:[%s3 + $0x30] sm:$0xff]
  %v459 = vld [vmem:[%s3 + $0x38] sm:$0xff]
  %v460 = vld [vmem:[%s3 + $0x40] sm:$0xff]
  %v461 = vpack.c.bf16 %v453, %v452
  %v462 = vpack.c.bf16 %v455, %v454
  %v463 = vpack.c.bf16 %v457, %v456
  %v464 = vpack.c.bf16 %v459, %v458
  %v465 = vpack.c.bf16 %v460, %v460
  %v466 = vld [vmem:[%s8] sm:$0xf]
  %v467 = vld [vmem:[%s8 + $0x4] sm:$0xf]
  %v468 = vld [vmem:[%s8 + $0x8] sm:$0xf]
  %v469 = vld [vmem:[%s8 + $0xc] sm:$0xf]
  %v470 = vld [vmem:[%s8 + $0x10] sm:$0xf]
  %v471 = vld [vmem:[%s8 + $0x14] sm:$0xf]
  %v472 = vld [vmem:[%s8 + $0x18] sm:$0xf]
  %v473 = vld [vmem:[%s8 + $0x1c] sm:$0xf]
  %v474 = vld [vmem:[%s8 + $0x20] sm:$0xf]
  %v475 = vld [vmem:[%s8 + $0x24] sm:$0xf]
  %v476 = vld [vmem:[%s8 + $0x28] sm:$0xf]
  %v477 = vld [vmem:[%s8 + $0x2c] sm:$0xf]
  %v478 = vld [vmem:[%s8 + $0x30] sm:$0xf]
  %v479 = vld [vmem:[%s8 + $0x34] sm:$0xf]
  %v480 = vld [vmem:[%s8 + $0x38] sm:$0xf]
  %v481 = vld [vmem:[%s8 + $0x3c] sm:$0xf]
  %v498 = vunpack.c.l.b16 %v466
  %v499 = vunpack.c.l.b16 %v467
  %v500 = vunpack.c.l.b16 %v468
  %v501 = vunpack.c.l.b16 %v469
  %v502 = vunpack.c.l.b16 %v470
  %v503 = vunpack.c.l.b16 %v471
  %v504 = vunpack.c.l.b16 %v472
  %v505 = vunpack.c.l.b16 %v473
  %v506 = vunpack.c.l.b16 %v474
  %v507 = vunpack.c.l.b16 %v475
  %v508 = vunpack.c.l.b16 %v476
  %v509 = vunpack.c.l.b16 %v477
  %v510 = vunpack.c.l.b16 %v478
  %v511 = vunpack.c.l.b16 %v479
  %v512 = vunpack.c.l.b16 %v480
  %v513 = vunpack.c.l.b16 %v481
  %v514 = vpack.c.b16 %v499, %v498
  %v515 = vpack.c.b16 %v501, %v500
  %v516 = vpack.c.b16 %v503, %v502
  %v517 = vpack.c.b16 %v505, %v504
  %v518 = vpack.c.b16 %v507, %v506
  %v519 = vpack.c.b16 %v509, %v508
  %v520 = vpack.c.b16 %v511, %v510
  %v521 = vpack.c.b16 %v513, %v512
  %530 = vmatprep.subr.bf16.mxu0 0
  %531 = vmatpush1.bf16.msra.mxu0 %v521
  %532 = vmatprep.subr.bf16.mxu0 0
  %533 = vmatpush1.bf16.msra.mxu0 %v520
  %534 = vmatprep.subr.bf16.mxu0 0
  %535 = vmatpush1.bf16.msra.mxu0 %v519
  %536 = vmatprep.subr.bf16.mxu0 0
  %537 = vmatpush1.bf16.msra.mxu0 %v518
  %538 = vmatprep.subr.bf16.mxu0 0
  %539 = vmatpush1.bf16.msra.mxu0 %v517
  %540 = vmatprep.subr.bf16.mxu0 0
  %541 = vmatpush1.bf16.msra.mxu0 %v516
  %542 = vmatprep.subr.bf16.mxu0 0
  %543 = vmatpush1.bf16.msra.mxu0 %v515
  %544 = vmatprep.subr.bf16.mxu0 0
  %545 = vmatpush1.bf16.msra.mxu0 %v514
  %546 = vmatprep.subr.bf16.mxu0 0
  %547 = vmatpush2.bf16.msra.mxu0 0
  %548 = vmatprep.subr.bf16.mxu0 0
  %549 = vmatpush2.bf16.msra.mxu0 0
  %550 = vmatprep.subr.bf16.mxu0 0
  %551 = vmatpush2.bf16.msra.mxu0 0
  %552 = vmatprep.subr.bf16.mxu0 0
  %553 = vmatpush2.bf16.msra.mxu0 0
  %554 = vmatprep.subr.bf16.mxu0 0
  %555 = vmatpush2.bf16.msra.mxu0 0
  %556 = vmatprep.subr.bf16.mxu0 0
  %557 = vmatpush2.bf16.msra.mxu0 0
  %558 = vmatprep.subr.bf16.mxu0 0
  %559 = vmatpush2.bf16.msra.mxu0 0
  %560 = vmatprep.subr.bf16.mxu0 0
  %561 = vmatpush2.bf16.msra.mxu0 0
  %562 = vmatprep.mubr.bf16.mxu0 0
  %563 = vmatmul.mubr.bf16.gmra.mxu0 %v461
  %v564 = vpop.f32.mrf.mxu0
  %v565 = vadd.f32 0.0, %v564
  %v566 = vpop.f32.mrf.mxu0
  %v567 = vpop.f32.mrf.mxu0
  %v568 = vadd.f32 0.0, %v567
  %v569 = vpop.f32.mrf.mxu0
  %570 = vmatprep.mubr.bf16.mxu0 0
  %571 = vmatmul.mubr.bf16.gmra.mxu0 %v462
  %v572 = vpop.f32.mrf.mxu0
  %v573 = vadd.f32 0.0, %v572
  %v574 = vpop.f32.mrf.mxu0
  %v575 = vpop.f32.mrf.mxu0
  %v576 = vadd.f32 0.0, %v575
  %v577 = vpop.f32.mrf.mxu0
  %578 = vmatprep.mubr.bf16.mxu0 0
  %579 = vmatmul.mubr.bf16.gmra.mxu0 %v463
  %v580 = vpop.f32.mrf.mxu0
  %v581 = vadd.f32 0.0, %v580
  %v582 = vpop.f32.mrf.mxu0
  %v583 = vpop.f32.mrf.mxu0
  %v584 = vadd.f32 0.0, %v583
  %v585 = vpop.f32.mrf.mxu0
  %586 = vmatprep.mubr.bf16.mxu0 0
  %587 = vmatmul.mubr.bf16.gmra.mxu0 %v464
  %v588 = vpop.f32.mrf.mxu0
  %v589 = vadd.f32 0.0, %v588
  %v590 = vpop.f32.mrf.mxu0
  %v591 = vpop.f32.mrf.mxu0
  %v592 = vadd.f32 0.0, %v591
  %v593 = vpop.f32.mrf.mxu0
  %594 = vmatprep.mubr.bf16.mxu0 0
  %595 = vmatmul.mubr.bf16.gmra.mxu0 %v465
  %v596 = vpop.f32.mrf.mxu0
  %v597 = vadd.f32 0.0, %v596
  %v598 = vpop.f32.mrf.mxu0
  %v599 = vpop.f32.mrf.mxu0
  %v600 = vpop.f32.mrf.mxu0
  %601 = vdwg.mxu0
  %v602 = vtanh.pop %v565
  %v603 = vtanh.pop %v568
  %v604 = vtanh.pop %v573
  %v605 = vtanh.pop %v576
  %v606 = vtanh.pop %v581
  %v607 = vtanh.pop %v584
  %v608 = vtanh.pop %v589
  %v609 = vtanh.pop %v592
  %v610 = vtanh.pop %v597
  %v611 = vmul.f32 %v602, %v602
  %v612 = vmul.f32 %v603, %v603
  %v613 = vmul.f32 %v604, %v604
  %v614 = vmul.f32 %v605, %v605
  %v615 = vmul.f32 %v606, %v606
  %v616 = vmul.f32 %v607, %v607
  %v617 = vmul.f32 %v608, %v608
  %v618 = vmul.f32 %v609, %v609
  %v619 = vmul.f32 %v610, %v610
  %620 = vadd.xlane.f32.xlu0 %v611
  %v621 = vpop.xlane.xlu0 %620
  %622 = vadd.xlane.f32.xlu0 %v612
  %v623 = vpop.xlane.xlu0 %622
  %624 = vadd.xlane.f32.xlu0 %v613
  %v625 = vpop.xlane.xlu0 %624
  %626 = vadd.xlane.f32.xlu0 %v614
  %v627 = vpop.xlane.xlu0 %626
  %628 = vadd.xlane.f32.xlu0 %v615
  %v629 = vpop.xlane.xlu0 %628
  %630 = vadd.xlane.f32.xlu0 %v616
  %v631 = vpop.xlane.xlu0 %630
  %632 = vadd.xlane.f32.xlu0 %v617
  %v633 = vpop.xlane.xlu0 %632
  %634 = vadd.xlane.f32.xlu0 %v618
  %v635 = vpop.xlane.xlu0 %634
  %636 = vadd.xlane.f32.xlu0 %v619
  %v637 = vpop.xlane.xlu0 %636
  %v638 = vmax.f32 %v621, 1e-24
  %v639 = vmax.f32 %v623, 1e-24
  %v640 = vmax.f32 %v625, 1e-24
  %v641 = vmax.f32 %v627, 1e-24
  %v642 = vmax.f32 %v629, 1e-24
  %v643 = vmax.f32 %v631, 1e-24
  %v644 = vmax.f32 %v633, 1e-24
  %v645 = vmax.f32 %v635, 1e-24
  %v646 = vmax.f32 %v637, 1e-24
  %v647 = vrsqrt.pop %v638
  %v648 = vrsqrt.pop %v639
  %v649 = vrsqrt.pop %v640
  %v650 = vrsqrt.pop %v641
  %v651 = vrsqrt.pop %v642
  %v652 = vrsqrt.pop %v643
  %v653 = vrsqrt.pop %v644
  %v654 = vrsqrt.pop %v645
  %v655 = vrsqrt.pop %v646
  %v656 = vmul.f32 %v602, %v647
  %v657 = vmul.f32 %v603, %v648
  %v658 = vmul.f32 %v604, %v649
  %v659 = vmul.f32 %v605, %v650
  %v660 = vmul.f32 %v606, %v651
  %v661 = vmul.f32 %v607, %v652
  %v662 = vmul.f32 %v608, %v653
  %v663 = vmul.f32 %v609, %v654
  %v664 = vmul.f32 %v610, %v655
  %v665 = vadd.f32 %v656, %v657
  %v666 = vadd.f32 %v665, %v658
  %v667 = vadd.f32 %v659, %v660
  %v668 = vadd.f32 %v667, %v661
  %v669 = vadd.f32 %v662, %v663
  %v670 = vadd.f32 %v669, %v664
  %672 = vset.pattern.permute.xlu0 0
  %673 = vperm.xlu0 %672, %v41
  %v674 = vpop.permute.xlu0 %673
  %677 = vset.pattern.permute.xlu0 0
  %678 = vperm.xlu0 %677, %v42
  %v679 = vpop.permute.xlu0 %678
  %682 = vset.pattern.permute.xlu0 0
  %683 = vperm.xlu0 %682, %v43
  %v684 = vpop.permute.xlu0 %683
  %v686 = vmul.f32 %v666, %v674
  %v687 = vmul.f32 %v668, %v679
  %v688 = vmul.f32 %v670, %v684
  %v689 = vld [vmem:[%s4] sm:$0xff]
  %v690 = vld [vmem:[%s4 + $0x8] sm:$0xff]
  %v691 = vld [vmem:[%s4 + $0x10] sm:$0xff]
  %v692 = vadd.f32 %v686, %v689
  %v693 = vadd.f32 %v687, %v690
  %v694 = vadd.f32 %v688, %v691
  %v695 = vmul.f32 %v686, %v689
  %v696 = vmul.f32 %v687, %v690
  %v697 = vmul.f32 %v688, %v691
  %v698 = vpack.c.bf16 %v693, %v692
  %v699 = vpack.c.bf16 %v696, %v695
  %v700 = vpack.c.bf16 %v694, %v694
  %v701 = vpack.c.bf16 %v697, %v697
  %v702 = vld [vmem:[%s9] sm:$0xf]
  %v703 = vld [vmem:[%s9 + $0x4] sm:$0xf]
  %v704 = vld [vmem:[%s9 + $0x8] sm:$0xf]
  %v705 = vld [vmem:[%s9 + $0xc] sm:$0xf]
  %v706 = vld [vmem:[%s9 + $0x10] sm:$0xf]
  %v707 = vld [vmem:[%s9 + $0x14] sm:$0xf]
  %v708 = vld [vmem:[%s9 + $0x18] sm:$0xf]
  %v709 = vld [vmem:[%s9 + $0x1c] sm:$0xf]
  %v710 = vld [vmem:[%s9 + $0x20] sm:$0xf]
  %v711 = vld [vmem:[%s9 + $0x24] sm:$0xf]
  %v712 = vld [vmem:[%s9 + $0x28] sm:$0xf]
  %v713 = vld [vmem:[%s9 + $0x2c] sm:$0xf]
  %v714 = vld [vmem:[%s9 + $0x30] sm:$0xf]
  %v715 = vld [vmem:[%s9 + $0x34] sm:$0xf]
  %v716 = vld [vmem:[%s9 + $0x38] sm:$0xf]
  %v717 = vld [vmem:[%s9 + $0x3c] sm:$0xf]
  %v718 = vld [vmem:[%s9 + $0x40] sm:$0xf]
  %v719 = vld [vmem:[%s9 + $0x44] sm:$0xf]
  %v720 = vld [vmem:[%s9 + $0x48] sm:$0xf]
  %v721 = vld [vmem:[%s9 + $0x4c] sm:$0xf]
  %v722 = vld [vmem:[%s9 + $0x50] sm:$0xf]
  %v723 = vld [vmem:[%s9 + $0x54] sm:$0xf]
  %v724 = vld [vmem:[%s9 + $0x58] sm:$0xf]
  %v725 = vld [vmem:[%s9 + $0x5c] sm:$0xf]
  %v726 = vld [vmem:[%s9 + $0x60] sm:$0xf]
  %v727 = vld [vmem:[%s9 + $0x64] sm:$0xf]
  %v728 = vld [vmem:[%s9 + $0x68] sm:$0xf]
  %v729 = vld [vmem:[%s9 + $0x6c] sm:$0xf]
  %v730 = vld [vmem:[%s9 + $0x70] sm:$0xf]
  %v731 = vld [vmem:[%s9 + $0x74] sm:$0xf]
  %v732 = vld [vmem:[%s9 + $0x78] sm:$0xf]
  %v733 = vld [vmem:[%s9 + $0x7c] sm:$0xf]
  %v766 = vunpack.c.l.b16 %v702
  %v767 = vunpack.c.l.b16 %v703
  %v768 = vunpack.c.l.b16 %v704
  %v769 = vunpack.c.l.b16 %v705
  %v770 = vunpack.c.l.b16 %v706
  %v771 = vunpack.c.l.b16 %v707
  %v772 = vunpack.c.l.b16 %v708
  %v773 = vunpack.c.l.b16 %v709
  %v774 = vunpack.c.l.b16 %v710
  %v775 = vunpack.c.l.b16 %v711
  %v776 = vunpack.c.l.b16 %v712
  %v777 = vunpack.c.l.b16 %v713
  %v778 = vunpack.c.l.b16 %v714
  %v779 = vunpack.c.l.b16 %v715
  %v780 = vunpack.c.l.b16 %v716
  %v781 = vunpack.c.l.b16 %v717
  %v782 = vunpack.c.l.b16 %v718
  %v783 = vunpack.c.l.b16 %v719
  %v784 = vunpack.c.l.b16 %v720
  %v785 = vunpack.c.l.b16 %v721
  %v786 = vunpack.c.l.b16 %v722
  %v787 = vunpack.c.l.b16 %v723
  %v788 = vunpack.c.l.b16 %v724
  %v789 = vunpack.c.l.b16 %v725
  %v790 = vunpack.c.l.b16 %v726
  %v791 = vunpack.c.l.b16 %v727
  %v792 = vunpack.c.l.b16 %v728
  %v793 = vunpack.c.l.b16 %v729
  %v794 = vunpack.c.l.b16 %v730
  %v795 = vunpack.c.l.b16 %v731
  %v796 = vunpack.c.l.b16 %v732
  %v797 = vunpack.c.l.b16 %v733
  %v798 = vpack.c.b16 %v767, %v766
  %v799 = vpack.c.b16 %v769, %v768
  %v800 = vpack.c.b16 %v771, %v770
  %v801 = vpack.c.b16 %v773, %v772
  %v802 = vpack.c.b16 %v775, %v774
  %v803 = vpack.c.b16 %v777, %v776
  %v804 = vpack.c.b16 %v779, %v778
  %v805 = vpack.c.b16 %v781, %v780
  %v806 = vpack.c.b16 %v783, %v782
  %v807 = vpack.c.b16 %v785, %v784
  %v808 = vpack.c.b16 %v787, %v786
  %v809 = vpack.c.b16 %v789, %v788
  %v810 = vpack.c.b16 %v791, %v790
  %v811 = vpack.c.b16 %v793, %v792
  %v812 = vpack.c.b16 %v795, %v794
  %v813 = vpack.c.b16 %v797, %v796
  %830 = vmatprep.subr.bf16.mxu0 0
  %831 = vmatpush1.bf16.msra.mxu0 %v805
  %832 = vmatprep.subr.bf16.mxu0 0
  %833 = vmatpush1.bf16.msra.mxu0 %v804
  %834 = vmatprep.subr.bf16.mxu0 0
  %835 = vmatpush1.bf16.msra.mxu0 %v803
  %836 = vmatprep.subr.bf16.mxu0 0
  %837 = vmatpush1.bf16.msra.mxu0 %v802
  %838 = vmatprep.subr.bf16.mxu0 0
  %839 = vmatpush1.bf16.msra.mxu0 %v801
  %840 = vmatprep.subr.bf16.mxu0 0
  %841 = vmatpush1.bf16.msra.mxu0 %v800
  %842 = vmatprep.subr.bf16.mxu0 0
  %843 = vmatpush1.bf16.msra.mxu0 %v799
  %844 = vmatprep.subr.bf16.mxu0 0
  %845 = vmatpush1.bf16.msra.mxu0 %v798
  %846 = vmatprep.subr.bf16.mxu0 0
  %847 = vmatpush2.bf16.msra.mxu0 %v813
  %848 = vmatprep.subr.bf16.mxu0 0
  %849 = vmatpush2.bf16.msra.mxu0 %v812
  %850 = vmatprep.subr.bf16.mxu0 0
  %851 = vmatpush2.bf16.msra.mxu0 %v811
  %852 = vmatprep.subr.bf16.mxu0 0
  %853 = vmatpush2.bf16.msra.mxu0 %v810
  %854 = vmatprep.subr.bf16.mxu0 0
  %855 = vmatpush2.bf16.msra.mxu0 %v809
  %856 = vmatprep.subr.bf16.mxu0 0
  %857 = vmatpush2.bf16.msra.mxu0 %v808
  %858 = vmatprep.subr.bf16.mxu0 0
  %859 = vmatpush2.bf16.msra.mxu0 %v807
  %860 = vmatprep.subr.bf16.mxu0 0
  %861 = vmatpush2.bf16.msra.mxu0 %v806
  %862 = vmatprep.mubr.bf16.mxu0 %v699
  %863 = vmatmul.mubr.bf16.gmra.mxu0 %v698
  %v864 = vpop.f32.mrf.mxu0
  %v865 = vadd.f32 0.0, %v864
  %v866 = vpop.f32.mrf.mxu0
  %v867 = vpop.f32.mrf.mxu0
  %v868 = vadd.f32 0.0, %v867
  %v869 = vpop.f32.mrf.mxu0
  %870 = vmatprep.mubr.bf16.mxu0 %v701
  %871 = vmatmul.mubr.bf16.gmra.mxu0 %v700
  %v872 = vpop.f32.mrf.mxu0
  %v873 = vadd.f32 0.0, %v872
  %v874 = vpop.f32.mrf.mxu0
  %v875 = vpop.f32.mrf.mxu0
  %v876 = vpop.f32.mrf.mxu0
  %877 = vdwg.mxu0
  %v878 = vtanh.pop %v865
  %v879 = vtanh.pop %v868
  %v880 = vtanh.pop %v873
  %v881 = vmul.f32 %v878, %v878
  %v882 = vmul.f32 %v879, %v879
  %v883 = vmul.f32 %v880, %v880
  %884 = vadd.xlane.f32.xlu0 %v881
  %v885 = vpop.xlane.xlu0 %884
  %886 = vadd.xlane.f32.xlu0 %v882
  %v887 = vpop.xlane.xlu0 %886
  %888 = vadd.xlane.f32.xlu0 %v883
  %v889 = vpop.xlane.xlu0 %888
  %v890 = vmax.f32 %v885, 1e-24
  %v891 = vmax.f32 %v887, 1e-24
  %v892 = vmax.f32 %v889, 1e-24
  %v893 = vrsqrt.pop %v890
  %v894 = vrsqrt.pop %v891
  %v895 = vrsqrt.pop %v892
  %v896 = vmul.f32 %v878, %v893
  %v897 = vmul.f32 %v879, %v894
  %v898 = vmul.f32 %v880, %v895
  %v899 = vadd.f32 %v896, %v897
  %v900 = vadd.f32 %v899, %v898
  %902 = vset.pattern.permute.xlu0 0
  %903 = vperm.xlu0 %902, %v40
  %v904 = vpop.permute.xlu0 %903
  %v906 = vmul.f32 %v900, %v904
  %v907 = vpack.c.bf16 %v906, %v906
  %v908 = vld [vmem:[%s10] sm:$0xf]
  %v909 = vld [vmem:[%s10 + $0x4] sm:$0xf]
  %v910 = vld [vmem:[%s10 + $0x8] sm:$0xf]
  %v911 = vld [vmem:[%s10 + $0xc] sm:$0xf]
  %v912 = vld [vmem:[%s10 + $0x10] sm:$0xf]
  %v913 = vld [vmem:[%s10 + $0x14] sm:$0xf]
  %v914 = vld [vmem:[%s10 + $0x18] sm:$0xf]
  %v915 = vld [vmem:[%s10 + $0x1c] sm:$0xf]
  %v916 = vld [vmem:[%s10 + $0x20] sm:$0xf]
  %v917 = vld [vmem:[%s10 + $0x24] sm:$0xf]
  %v918 = vld [vmem:[%s10 + $0x28] sm:$0xf]
  %v919 = vld [vmem:[%s10 + $0x2c] sm:$0xf]
  %v920 = vld [vmem:[%s10 + $0x30] sm:$0xf]
  %v921 = vld [vmem:[%s10 + $0x34] sm:$0xf]
  %v922 = vld [vmem:[%s10 + $0x38] sm:$0xf]
  %v923 = vld [vmem:[%s10 + $0x3c] sm:$0xf]
  %v940 = vunpack.c.l.b16 %v908
  %v941 = vunpack.c.l.b16 %v909
  %v942 = vunpack.c.l.b16 %v910
  %v943 = vunpack.c.l.b16 %v911
  %v944 = vunpack.c.l.b16 %v912
  %v945 = vunpack.c.l.b16 %v913
  %v946 = vunpack.c.l.b16 %v914
  %v947 = vunpack.c.l.b16 %v915
  %v948 = vunpack.c.l.b16 %v916
  %v949 = vunpack.c.l.b16 %v917
  %v950 = vunpack.c.l.b16 %v918
  %v951 = vunpack.c.l.b16 %v919
  %v952 = vunpack.c.l.b16 %v920
  %v953 = vunpack.c.l.b16 %v921
  %v954 = vunpack.c.l.b16 %v922
  %v955 = vunpack.c.l.b16 %v923
  %v956 = vpack.c.b16 %v941, %v940
  %v957 = vpack.c.b16 %v943, %v942
  %v958 = vpack.c.b16 %v945, %v944
  %v959 = vpack.c.b16 %v947, %v946
  %v960 = vpack.c.b16 %v949, %v948
  %v961 = vpack.c.b16 %v951, %v950
  %v962 = vpack.c.b16 %v953, %v952
  %v963 = vpack.c.b16 %v955, %v954
  %972 = vmatprep.subr.bf16.mxu0 0
  %973 = vmatpush1.bf16.msra.mxu0 %v963
  %974 = vmatprep.subr.bf16.mxu0 0
  %975 = vmatpush1.bf16.msra.mxu0 %v962
  %976 = vmatprep.subr.bf16.mxu0 0
  %977 = vmatpush1.bf16.msra.mxu0 %v961
  %978 = vmatprep.subr.bf16.mxu0 0
  %979 = vmatpush1.bf16.msra.mxu0 %v960
  %980 = vmatprep.subr.bf16.mxu0 0
  %981 = vmatpush1.bf16.msra.mxu0 %v959
  %982 = vmatprep.subr.bf16.mxu0 0
  %983 = vmatpush1.bf16.msra.mxu0 %v958
  %984 = vmatprep.subr.bf16.mxu0 0
  %985 = vmatpush1.bf16.msra.mxu0 %v957
  %986 = vmatprep.subr.bf16.mxu0 0
  %987 = vmatpush1.bf16.msra.mxu0 %v956
  %988 = vmatprep.subr.bf16.mxu0 0
  %989 = vmatpush2.bf16.msra.mxu0 0
  %990 = vmatprep.subr.bf16.mxu0 0
  %991 = vmatpush2.bf16.msra.mxu0 0
  %992 = vmatprep.subr.bf16.mxu0 0
  %993 = vmatpush2.bf16.msra.mxu0 0
  %994 = vmatprep.subr.bf16.mxu0 0
  %995 = vmatpush2.bf16.msra.mxu0 0
  %996 = vmatprep.subr.bf16.mxu0 0
  %997 = vmatpush2.bf16.msra.mxu0 0
  %998 = vmatprep.subr.bf16.mxu0 0
  %999 = vmatpush2.bf16.msra.mxu0 0
  %1000 = vmatprep.subr.bf16.mxu0 0
  %1001 = vmatpush2.bf16.msra.mxu0 0
  %1002 = vmatprep.subr.bf16.mxu0 0
  %1003 = vmatpush2.bf16.msra.mxu0 0
  %1004 = vmatprep.mubr.bf16.mxu0 0
  %1005 = vmatmul.mubr.bf16.gmra.mxu0 %v907
  %v1006 = vpop.f32.mrf.mxu0
  %v1007 = vadd.f32 0.0, %v1006
  %v1008 = vpop.f32.mrf.mxu0
  %v1009 = vpop.f32.mrf.mxu0
  %v1010 = vpop.f32.mrf.mxu0
  %1011 = vdwg.mxu0
  %v1012 = vtanh.pop %v1007
  %v1013 = vmul.f32 %v451, %v1012
  %1014 = vadd.xlane.f32.xlu0 %v1013
  %v1015 = vpop.xlane.xlu0 %1014
  %1016 = vst [vmem:[%s11] sm:$0xff] %v1015
  // Predicated region
  $region46: #{hgnn_fused_forward.1} parent=0 // pred_check
    _
  $region47: #{hgnn_fused_forward.1} parent=0 // pred_check_branch
    %1018 = sbr.rel (0) target = $region49
  $region48: #{hgnn_fused_forward.1} parent=0 // pred_region
    _
  $region49: #{hgnn_fused_forward.1} parent=0 // pred_fallthru
    _
  // Predicated region
  $region50: #{hgnn_fused_forward.1} parent=0 // pred_check
    _
  $region51: #{hgnn_fused_forward.1} parent=0 // pred_check_branch
    %1020 = sbr.rel (0) target = $region53
  $region52: #{hgnn_fused_forward.1} parent=0 // pred_region
    _
  $region53: #{hgnn_fused_forward.1} parent=0 // pred_fallthru
    _

</llo_original>
